<compile_context>
chip_gen: v7x
topology: tpu7x:2x2x1
jax: 0.10.0
libtpu: 0.0.40
codegen_flags: <defaults>
</compile_context>

<pallas_src>
import math

import jax
import jax.numpy as jnp
from jax import lax
from jax.experimental import pallas as pl
from jax.experimental.pallas import tpu as pltpu


def _mha_kernel(x_ref, wqkv_ref, bqkv_ref, wo_ref, bo_ref, o_ref, acc_ref):
    """One (batch element, head) pair per grid step.

    x_ref    : [S, E]        f32   hidden state rows of this batch element
                                    (block index constant over h -> resident)
    wqkv_ref : [1, 3, E, D]  bf16  this head's q/k/v weights (q pre-scaled)
    bqkv_ref : [1, 3, 1, D]  f32   this head's q/k/v biases  (q pre-scaled)
    wo_ref   : [1, D, E]     bf16  this head's slab of the output projection
    bo_ref   : [1, E]        f32   output bias (resident)
    o_ref    : [S, E]        f32   output rows (written at last head)
    acc_ref  : [S, E]        f32   VMEM scratch accumulator over heads
    """
    h = pl.program_id(1)

    @pl.when(h == 0)
    def _init():
        acc_ref[...] = jnp.zeros_like(acc_ref)

    x = x_ref[...].astype(jnp.bfloat16)                                  # [S, E]

    # Per-head Q/K/V projections: bf16 MXU matmuls, f32 accumulation,
    # f32 bias add. The 1/sqrt(D) scale is already folded into Q weight/bias.
    q = jnp.dot(x, wqkv_ref[0, 0, :, :],
                preferred_element_type=jnp.float32) + bqkv_ref[0, 0, :, :]
    k = jnp.dot(x, wqkv_ref[0, 1, :, :],
                preferred_element_type=jnp.float32) + bqkv_ref[0, 1, :, :]
    v = jnp.dot(x, wqkv_ref[0, 2, :, :],
                preferred_element_type=jnp.float32) + bqkv_ref[0, 2, :, :]

    # scores[s, t] = sum_d q[s, d] * k[t, d]  -- contract on D, no k.T relayout.
    scores = lax.dot_general(
        q.astype(jnp.bfloat16), k.astype(jnp.bfloat16),
        (((1,), (1,)), ((), ())),
        preferred_element_type=jnp.float32)                              # [S, S]

    # Softmax statistics in f32; reciprocal on the EUP.
    m = jnp.max(scores, axis=-1, keepdims=True)
    e = jnp.exp(scores - m)
    p = e * pl.reciprocal(jnp.sum(e, axis=-1, keepdims=True), approx=True)

    ctx = jnp.dot(p.astype(jnp.bfloat16), v.astype(jnp.bfloat16),
                  preferred_element_type=jnp.float32)                    # [S, D]

    # Fold the concat into the output projection: accumulate this head's
    # contribution ctx_h @ Wo[h*D:(h+1)*D, :] into the VMEM f32 scratch.
    acc_ref[...] += jnp.dot(ctx.astype(jnp.bfloat16), wo_ref[0, :, :],
                            preferred_element_type=jnp.float32)          # [S, E]

    @pl.when(h == pl.num_programs(1) - 1)
    def _finalize():
        o_ref[...] = (acc_ref[...] + bo_ref[...]).astype(o_ref.dtype)


def multi_head_attention(x, wq, bq, wk, bk, wv, bv, wo, bo):
    """x: [B, S, E]; wq/wk/wv: [H, E, D]; bq/bk/bv: [H, 1, D]; wo: [E, E]; bo: [1, E]."""
    B, S, E = x.shape
    H, E2, D = wq.shape
    assert E2 == E and H * D == E, "expects embed_dim divisible by num_heads"

    # --- host-side packing -------------------------------------------------
    scale = 1.0 / math.sqrt(D)
    wqkv = jnp.stack([wq * scale, wk, wv], axis=1).astype(jnp.bfloat16)  # [H,3,E,D]
    bqkv = jnp.stack([bq * scale, bk, bv], axis=1).astype(jnp.float32)   # [H,3,1,D]
    wo_h = wo.reshape(H, D, E).astype(jnp.bfloat16)                      # [H,D,E]
    bo2 = bo.reshape(1, E).astype(jnp.float32)                           # [1,E]

    x2 = x.reshape(B * S, E)

    out2 = pl.pallas_call(
        _mha_kernel,
        out_shape=jax.ShapeDtypeStruct((B * S, E), x.dtype),
        grid=(B, H),
        in_specs=[
            pl.BlockSpec((S, E), lambda b, h: (b, 0)),              # x rows of batch b
            pl.BlockSpec((1, 3, E, D), lambda b, h: (h, 0, 0, 0)),  # head-h qkv weights
            pl.BlockSpec((1, 3, 1, D), lambda b, h: (h, 0, 0, 0)),  # head-h qkv biases
            pl.BlockSpec((1, D, E), lambda b, h: (h, 0, 0)),        # head-h slab of Wo
            pl.BlockSpec((1, E), lambda b, h: (0, 0)),              # bo (resident)
        ],
        out_specs=pl.BlockSpec((S, E), lambda b, h: (b, 0)),
        scratch_shapes=[pltpu.VMEM((S, E), jnp.float32)],           # per-block accumulator
        compiler_params=pltpu.CompilerParams(
            dimension_semantics=("parallel", "arbitrary"),
        ),
    )(x2, wqkv, bqkv, wo_h, bo2)
    return out2.reshape(B, S, E)


def reference_mha(x, wq, bq, wk, bk, wv, bv, wo, bo):
    """Pure-JAX f32 reference mirroring the PyTorch forward exactly."""
    H, E, D = wq.shape
    outs = []
    for h in range(H):
        q = x @ wq[h] + bq[h]
        k = x @ wk[h] + bk[h]
        v = x @ wv[h] + bv[h]
        scores = jnp.einsum("bsd,btd->bst", q, k) / math.sqrt(D)
        w = jax.nn.softmax(scores, axis=-1)
        outs.append(jnp.einsum("bst,btd->bsd", w, v))
    concat = jnp.concatenate(outs, axis=-1)
    return concat @ wo + bo


if __name__ == "__main__":
    # Small config consistent with the module: hidden_size=32, num_heads=4.
    B, S, E, H = 2, 8, 32, 4
    D = E // H

    key = jax.random.PRNGKey(0)
    ks = jax.random.split(key, 9)
    x = jax.random.normal(ks[0], (B, S, E), dtype=jnp.float32)

    def init_w(k, shape):
        return jax.random.normal(k, shape, dtype=jnp.float32) * 0.05

    wq = init_w(ks[1], (H, E, D)); bq = init_w(ks[2], (H, 1, D))
    wk = init_w(ks[3], (H, E, D)); bk = init_w(ks[4], (H, 1, D))
    wv = init_w(ks[5], (H, E, D)); bv = init_w(ks[6], (H, 1, D))
    wo = init_w(ks[7], (E, E));    bo = init_w(ks[8], (1, E))

    out = multi_head_attention(x, wq, bq, wk, bk, wv, bv, wo, bo)
    out = jax.block_until_ready(out)

    ref = reference_mha(x, wq, bq, wk, bk, wv, bv, wo, bo)
    assert out.shape == (B, S, E)
    # bf16 MXU matmuls (f32 accumulation) + approx reciprocal -> ~1e-3 error.
    assert jnp.allclose(out, ref, atol=2e-2, rtol=2e-2), "mismatch vs reference"

    print("KERNEL_OK")
</pallas_src>

<mosaic_0001>
module attributes {stable_mosaic.version = 11 : i64} {
  func.func @_mha_kernel(%arg0: i32, %arg1: i32, %arg2: memref<8x32xf32, #tpu.memory_space<vmem>>, %arg3: memref<1x3x32x8xbf16, #tpu.memory_space<vmem>>, %arg4: memref<1x3x1x8xf32, #tpu.memory_space<vmem>>, %arg5: memref<1x8x32xbf16, #tpu.memory_space<vmem>>, %arg6: memref<1x32xf32, #tpu.memory_space<vmem>>, %arg7: memref<8x32xf32, #tpu.memory_space<vmem>>, %arg8: memref<8x32xf32, #tpu.memory_space<vmem>>) attributes {dimension_semantics = [#tpu.dimension_semantics<parallel>, #tpu.dimension_semantics<arbitrary>], iteration_bounds = array<i64: 2, 4>, scalar_prefetch = 0 : i64, scratch_operands = 1 : i64, tpu.core_type = #tpu.core_type<tc>, window_params = [{transform_indices = @transform_0, window_bounds = array<i64: 8, 32>}, {transform_indices = @transform_1, window_bounds = array<i64: 1, 3, 32, 8>}, {transform_indices = @transform_2, window_bounds = array<i64: 1, 3, 1, 8>}, {transform_indices = @transform_3, window_bounds = array<i64: 1, 8, 32>}, {pipeline_mode = #tpu.pipeline_mode<synchronous>, transform_indices = @transform_4, window_bounds = array<i64: 1, 32>}, {transform_indices = @transform_5, window_bounds = array<i64: 8, 32>}]} {
    %c0_i32 = arith.constant 0 : i32
    %0 = arith.cmpi eq, %arg1, %c0_i32 : i32
    %1 = arith.extui %0 : i1 to i32
    %c0_i32_0 = arith.constant 0 : i32
    %2 = arith.cmpi ne, %1, %c0_i32_0 : i32
    scf.if %2 {
      %cst_39 = arith.constant 0.000000e+00 : f32
      %52 = vector.broadcast %cst_39 : f32 to vector<8x32xf32>
      %c0_40 = arith.constant 0 : index
      %c0_41 = arith.constant 0 : index
      %53 = vector.load %arg8[%c0_40, %c0_41] : memref<8x32xf32, #tpu.memory_space<vmem>>, vector<8x32xf32>
      tpu.vector_store %arg8[%c0_40, %c0_41], %52 {strides = array<i32>} : memref<8x32xf32, #tpu.memory_space<vmem>>, vector<8x32xf32>,
    } else {
    }
    %c0 = arith.constant 0 : index
    %c0_1 = arith.constant 0 : index
    %3 = vector.load %arg2[%c0, %c0_1] : memref<8x32xf32, #tpu.memory_space<vmem>>, vector<8x32xf32>
    %4 = arith.truncf %3 : vector<8x32xf32> to vector<8x32xbf16>
    %c0_2 = arith.constant 0 : index
    %c0_3 = arith.constant 0 : index
    %c0_4 = arith.constant 0 : index
    %c0_5 = arith.constant 0 : index
    %5 = vector.load %arg3[%c0_2, %c0_3, %c0_4, %c0_5] : memref<1x3x32x8xbf16, #tpu.memory_space<vmem>>, vector<1x1x32x8xbf16>
    %6 = vector.shape_cast %5 : vector<1x1x32x8xbf16> to vector<32x8xbf16>
    %cst = arith.constant dense<0.000000e+00> : vector<8x8xf32>
    %7 = tpu.matmul %4, %6, %cst {dimension_numbers = #tpu.dot_dimension_numbers<[1], [0], [0], [1], [0, 0, 1, 1], [], []>} : vector<8x32xbf16>, vector<32x8xbf16>, vector<8x8xf32> -> vector<8x8xf32>
    %c0_6 = arith.constant 0 : index
    %c0_7 = arith.constant 0 : index
    %c0_8 = arith.constant 0 : index
    %c0_9 = arith.constant 0 : index
    %8 = vector.load %arg4[%c0_6, %c0_7, %c0_8, %c0_9] : memref<1x3x1x8xf32, #tpu.memory_space<vmem>>, vector<1x1x1x8xf32>
    %9 = vector.shape_cast %8 : vector<1x1x1x8xf32> to vector<1x8xf32>
    %10 = vector.broadcast %9 : vector<1x8xf32> to vector<8x8xf32>
    %11 = arith.addf %7, %10 : vector<8x8xf32>
    %c0_10 = arith.constant 0 : index
    %c1 = arith.constant 1 : index
    %c0_11 = arith.constant 0 : index
    %c0_12 = arith.constant 0 : index
    %12 = vector.load %arg3[%c0_10, %c1, %c0_11, %c0_12] : memref<1x3x32x8xbf16, #tpu.memory_space<vmem>>, vector<1x1x32x8xbf16>
    %13 = vector.shape_cast %12 : vector<1x1x32x8xbf16> to vector<32x8xbf16>
    %cst_13 = arith.constant dense<0.000000e+00> : vector<8x8xf32>
    %14 = tpu.matmul %4, %13, %cst_13 {dimension_numbers = #tpu.dot_dimension_numbers<[1], [0], [0], [1], [0, 0, 1, 1], [], []>} : vector<8x32xbf16>, vector<32x8xbf16>, vector<8x8xf32> -> vector<8x8xf32>
    %c0_14 = arith.constant 0 : index
    %c1_15 = arith.constant 1 : index
    %c0_16 = arith.constant 0 : index
    %c0_17 = arith.constant 0 : index
    %15 = vector.load %arg4[%c0_14, %c1_15, %c0_16, %c0_17] : memref<1x3x1x8xf32, #tpu.memory_space<vmem>>, vector<1x1x1x8xf32>
    %16 = vector.shape_cast %15 : vector<1x1x1x8xf32> to vector<1x8xf32>
    %17 = vector.broadcast %16 : vector<1x8xf32> to vector<8x8xf32>
    %18 = arith.addf %14, %17 : vector<8x8xf32>
    %c0_18 = arith.constant 0 : index
    %c2 = arith.constant 2 : index
    %c0_19 = arith.constant 0 : index
    %c0_20 = arith.constant 0 : index
    %19 = vector.load %arg3[%c0_18, %c2, %c0_19, %c0_20] : memref<1x3x32x8xbf16, #tpu.memory_space<vmem>>, vector<1x1x32x8xbf16>
    %20 = vector.shape_cast %19 : vector<1x1x32x8xbf16> to vector<32x8xbf16>
    %cst_21 = arith.constant dense<0.000000e+00> : vector<8x8xf32>
    %21 = tpu.matmul %4, %20, %cst_21 {dimension_numbers = #tpu.dot_dimension_numbers<[1], [0], [0], [1], [0, 0, 1, 1], [], []>} : vector<8x32xbf16>, vector<32x8xbf16>, vector<8x8xf32> -> vector<8x8xf32>
    %c0_22 = arith.constant 0 : index
    %c2_23 = arith.constant 2 : index
    %c0_24 = arith.constant 0 : index
    %c0_25 = arith.constant 0 : index
    %22 = vector.load %arg4[%c0_22, %c2_23, %c0_24, %c0_25] : memref<1x3x1x8xf32, #tpu.memory_space<vmem>>, vector<1x1x1x8xf32>
    %23 = vector.shape_cast %22 : vector<1x1x1x8xf32> to vector<1x8xf32>
    %24 = vector.broadcast %23 : vector<1x8xf32> to vector<8x8xf32>
    %25 = arith.addf %21, %24 : vector<8x8xf32>
    %26 = arith.truncf %11 : vector<8x8xf32> to vector<8x8xbf16>
    %27 = arith.truncf %18 : vector<8x8xf32> to vector<8x8xbf16>
    %cst_26 = arith.constant dense<0.000000e+00> : vector<8x8xf32>
    %28 = tpu.matmul %26, %27, %cst_26 {dimension_numbers = #tpu.dot_dimension_numbers<[1], [1], [0], [0], [0, 0, 1, 0], [], []>} : vector<8x8xbf16>, vector<8x8xbf16>, vector<8x8xf32> -> vector<8x8xf32>
    %cst_27 = arith.constant dense<0xFF800000> : vector<8xf32>
    %29 = vector.multi_reduction <maximumf>, %28, %cst_27 [1] : vector<8x8xf32> to vector<8xf32>
    %30 = vector.shape_cast %29 : vector<8xf32> to vector<8x1xf32>
    %31 = vector.broadcast %30 : vector<8x1xf32> to vector<8x8xf32>
    %32 = arith.subf %28, %31 : vector<8x8xf32>
    %33 = math.exp %32 : vector<8x8xf32>
    %cst_28 = arith.constant dense<0.000000e+00> : vector<8xf32>
    %34 = vector.multi_reduction <add>, %33, %cst_28 [1] : vector<8x8xf32> to vector<8xf32>
    %35 = vector.shape_cast %34 : vector<8xf32> to vector<8x1xf32>
    %36 = tpu.reciprocal %35 {approx = true} : vector<8x1xf32> -> vector<8x1xf32>
    %37 = vector.broadcast %36 : vector<8x1xf32> to vector<8x8xf32>
    %38 = arith.mulf %33, %37 : vector<8x8xf32>
    %39 = arith.truncf %38 : vector<8x8xf32> to vector<8x8xbf16>
    %40 = arith.truncf %25 : vector<8x8xf32> to vector<8x8xbf16>
    %cst_29 = arith.constant dense<0.000000e+00> : vector<8x8xf32>
    %41 = tpu.matmul %39, %40, %cst_29 {dimension_numbers = #tpu.dot_dimension_numbers<[1], [0], [0], [1], [0, 0, 1, 1], [], []>} : vector<8x8xbf16>, vector<8x8xbf16>, vector<8x8xf32> -> vector<8x8xf32>
    %c0_30 = arith.constant 0 : index
    %c0_31 = arith.constant 0 : index
    %42 = vector.load %arg8[%c0_30, %c0_31] : memref<8x32xf32, #tpu.memory_space<vmem>>, vector<8x32xf32>
    %43 = arith.truncf %41 : vector<8x8xf32> to vector<8x8xbf16>
    %c0_32 = arith.constant 0 : index
    %c0_33 = arith.constant 0 : index
    %c0_34 = arith.constant 0 : index
    %44 = vector.load %arg5[%c0_32, %c0_33, %c0_34] : memref<1x8x32xbf16, #tpu.memory_space<vmem>>, vector<1x8x32xbf16>
    %45 = vector.shape_cast %44 : vector<1x8x32xbf16> to vector<8x32xbf16>
    %cst_35 = arith.constant dense<0.000000e+00> : vector<8x32xf32>
    %46 = tpu.matmul %43, %45, %cst_35 {dimension_numbers = #tpu.dot_dimension_numbers<[1], [0], [0], [1], [0, 0, 1, 1], [], []>} : vector<8x8xbf16>, vector<8x32xbf16>, vector<8x32xf32> -> vector<8x32xf32>
    %47 = arith.addf %42, %46 : vector<8x32xf32>
    %c0_36 = arith.constant 0 : index
    %c0_37 = arith.constant 0 : index
    %48 = vector.load %arg8[%c0_36, %c0_37] : memref<8x32xf32, #tpu.memory_space<vmem>>, vector<8x32xf32>
    tpu.vector_store %arg8[%c0_36, %c0_37], %47 {strides = array<i32>} : memref<8x32xf32, #tpu.memory_space<vmem>>, vector<8x32xf32>,
    %c3_i32 = arith.constant 3 : i32
    %49 = arith.cmpi eq, %arg1, %c3_i32 : i32
    %50 = arith.extui %49 : i1 to i32
    %c0_i32_38 = arith.constant 0 : i32
    %51 = arith.cmpi ne, %50, %c0_i32_38 : i32
    scf.if %51 {
      %c0_39 = arith.constant 0 : index
      %c0_40 = arith.constant 0 : index
      %52 = vector.load %arg8[%c0_39, %c0_40] : memref<8x32xf32, #tpu.memory_space<vmem>>, vector<8x32xf32>
      %c0_41 = arith.constant 0 : index
      %c0_42 = arith.constant 0 : index
      %53 = vector.load %arg6[%c0_41, %c0_42] : memref<1x32xf32, #tpu.memory_space<vmem>>, vector<1x32xf32>
      %54 = vector.broadcast %53 : vector<1x32xf32> to vector<8x32xf32>
      %55 = arith.addf %52, %54 : vector<8x32xf32>
      %c0_43 = arith.constant 0 : index
      %c0_44 = arith.constant 0 : index
      %56 = vector.load %arg7[%c0_43, %c0_44] : memref<8x32xf32, #tpu.memory_space<vmem>>, vector<8x32xf32>
      tpu.vector_store %arg7[%c0_43, %c0_44], %55 {strides = array<i32>} : memref<8x32xf32, #tpu.memory_space<vmem>>, vector<8x32xf32>,
    } else {
    }
    return
  }
  func.func @transform_0(%arg0: i32, %arg1: i32) -> (i32, i32) {
    %c0_i32 = arith.constant 0 : i32
    %c0_i32_0 = arith.constant 0 : i32
    return %arg0, %c0_i32 : i32, i32
  }
  func.func @transform_1(%arg0: i32, %arg1: i32) -> (i32, i32, i32, i32) {
    %c0_i32 = arith.constant 0 : i32
    %c0_i32_0 = arith.constant 0 : i32
    %c0_i32_1 = arith.constant 0 : i32
    %c0_i32_2 = arith.constant 0 : i32
    return %arg1, %c0_i32, %c0_i32_0, %c0_i32_1 : i32, i32, i32, i32
  }
  func.func @transform_2(%arg0: i32, %arg1: i32) -> (i32, i32, i32, i32) {
    %c0_i32 = arith.constant 0 : i32
    %c0_i32_0 = arith.constant 0 : i32
    %c0_i32_1 = arith.constant 0 : i32
    %c0_i32_2 = arith.constant 0 : i32
    return %arg1, %c0_i32, %c0_i32_0, %c0_i32_1 : i32, i32, i32, i32
  }
  func.func @transform_3(%arg0: i32, %arg1: i32) -> (i32, i32, i32) {
    %c0_i32 = arith.constant 0 : i32
    %c0_i32_0 = arith.constant 0 : i32
    %c0_i32_1 = arith.constant 0 : i32
    return %arg1, %c0_i32, %c0_i32_0 : i32, i32, i32
  }
  func.func @transform_4(%arg0: i32, %arg1: i32) -> (i32, i32) {
    %c0_i32 = arith.constant 0 : i32
    %c0_i32_0 = arith.constant 0 : i32
    %c0_i32_1 = arith.constant 0 : i32
    return %c0_i32, %c0_i32_0 : i32, i32
  }
  func.func @transform_5(%arg0: i32, %arg1: i32) -> (i32, i32) {
    %c0_i32 = arith.constant 0 : i32
    %c0_i32_0 = arith.constant 0 : i32
    return %arg0, %c0_i32 : i32, i32
  }
}

</mosaic_0001>

<llo_original>
// kernel: tpu_custom_call.1
$region0: #{tpu_custom_call.1}
  #allocation0 [shape = 'u32[]', space=smem, size = 0x4, offset = 0x4, fixed_abs, tag = 'smem constant byte address 0x4 - core index']
  #allocation1 [shape = 'u32[144,128]{1,0:T(1,128)}', space=vmem, size = 0x12000, scoped, tag = 'internal scratch']
  #allocation2 [shape = 'f32[8,32]{1,0:T(8,128)}', space=vmem, size = 0x1000, scoped, tag = 'scratch operand']
  %s0 = inlined_call_operand.vmem [shape: f32[16,32], index: 0, kind: input, shape index: {}]
  %s1 = inlined_call_operand.vmem [shape: bf16[4,3,32,8], index: 1, kind: input, shape index: {}]
  %s2 = inlined_call_operand.vmem [shape: f32[4,3,1,8], index: 2, kind: input, shape index: {}]
  %s3 = inlined_call_operand.vmem [shape: bf16[4,8,32], index: 3, kind: input, shape index: {}]
  %s4 = inlined_call_operand.vmem [shape: f32[1,32], index: 4, kind: input, shape index: {}]
  %s5 = inlined_call_operand.hbm [shape: f32[16,32], index: 5, kind: output, shape index: {}]
  %s6 = sld [smem:[#allocation0]]
  $region61: #{tpu_custom_call.1} parent=0
    _
  %s8 = ssub.s32 1, %s6
  %s9 = scalar_select 0, %s8, %s6
  $region1: #{tpu_custom_call.1} parent=0
    #allocation3 [shape = 'u8[8192]{0}', space=vmem, size = 0x2000, scoped, tag = 'output window, operand 0']
    #allocation4 [shape = 's32[2]{0}', space=sflag, size = 0x8, scoped, tag = 'scoped memory for tpu_custom_call.1']
    %10 = vsyncpa [#allocation4], 0
    %s11 = scalar_lea.sflag [#allocation4], 1
    %12 = vsyncpa %s11, 0
    loop: start=0, step=1, limit=10
    $region2: #{tpu_custom_call.1} parent=1 // loop_pre_header
      _
    $region3: #{tpu_custom_call.1} parent=1 // loop_header
      %s14 = sphi 0, %s18
      %p15 = scmp.ge.s32.totalorder %s14, 10
      %s21 = sphi 0, %s33
      %s22 = sphi 0, %s29
      %s23 = sphi 0, %s21
      %s24 = sphi 0, %s22
      %s25 = sphi 0, %s23
      %s26 = sphi 0, %s24
      %s36 = sphi 0, %s38
      %s39 = sphi 0, %s36
      %s40 = sphi 0, %s39
      %s56 = sphi 0, %s40
      %s62 = sphi 0, %s64
      %s65 = sphi 0, %s62
      %s66 = sphi 0, %s65
      %s82 = sphi 0, %s66
      %s88 = sphi 0, %s90
      %s91 = sphi 0, %s88
      %s92 = sphi 0, %s91
      %s108 = sphi 0, %s92
      %s114 = sphi 0, %s116
      %s117 = sphi 0, %s114
      %s118 = sphi 0, %s117
      %s134 = sphi 0, %s118
      %s138 = sphi 0, %s138
      %s140 = sphi 0, %s138
      %s141 = sphi 0, %s140
      %s155 = sphi 0, %s141
      %s161 = sphi 0, %s163
      %s164 = sphi 0, %s161
      %s165 = sphi 0, %s164
      %s181 = sphi 0, %s165
    $region4: #{tpu_custom_call.1} parent=1 // loop_header_branch
      %17 = sbr.rel (%p15) target = $region8
    $region5: #{tpu_custom_call.1} parent=1 // loop_body
      %s19 = ssub.s32 %s14, 1
      %s20 = ssub.s32 %s14, 2
      %s27 = sadd.s32 1, %s22
      %p28 = scmp.ge.s32.totalorder %s27, 4
      %s29 = scalar_select %p28, 0, %s27
      %s30 = sadd.s32 1, %s21
      %s31 = scalar_select %p28, %s30, %s21
      %p32 = scmp.ge.s32.totalorder %s31, 2
      %s33 = scalar_select %p32, 0, %s31
      %s34 = ssub.s32 %s21, %s33
      %p35 = scmp.eq.s32.totalorder %s34, 0
      %s37 = sadd.s32 %s36, 1
      %s38 = scalar_select %p35, %s36, %s37
      %p41 = pneg %p35
      %p42 = scmp.eq.s32.totalorder %s14, 7
      %p43 = por %p41, %p42
      %p44 = scmp.ne.s32.totalorder %s36, %s39
      %p45 = scmp.eq.s32.totalorder %s14, 0
      %p46 = por %p44, %p45
      %p47 = scmp.ne.s32.totalorder %s36, %s39
      %p48 = scmp.eq.s32.totalorder %s19, 7
      %p49 = por %p47, %p48
      %p50 = scmp.ne.s32.totalorder %s39, %s40
      %p51 = scmp.eq.s32.totalorder %s19, 0
      %p52 = por %p50, %p51
      %p53 = scmp.ne.s32.totalorder %s39, %s40
      %p54 = scmp.eq.s32.totalorder %s20, 7
      %p55 = por %p53, %p54
      %p57 = scmp.ne.s32.totalorder %s40, %s56
      %p58 = scmp.eq.s32.totalorder %s20, 0
      %p59 = por %p57, %p58
      %s60 = ssub.s32 %s22, %s29
      %p61 = scmp.eq.s32.totalorder %s60, 0
      %s63 = sadd.s32 %s62, 1
      %s64 = scalar_select %p61, %s62, %s63
      %p67 = pneg %p61
      %p68 = scmp.eq.s32.totalorder %s14, 7
      %p69 = por %p67, %p68
      %p70 = scmp.ne.s32.totalorder %s62, %s65
      %p71 = scmp.eq.s32.totalorder %s14, 0
      %p72 = por %p70, %p71
      %p73 = scmp.ne.s32.totalorder %s62, %s65
      %p74 = scmp.eq.s32.totalorder %s19, 7
      %p75 = por %p73, %p74
      %p76 = scmp.ne.s32.totalorder %s65, %s66
      %p77 = scmp.eq.s32.totalorder %s19, 0
      %p78 = por %p76, %p77
      %p79 = scmp.ne.s32.totalorder %s65, %s66
      %p80 = scmp.eq.s32.totalorder %s20, 7
      %p81 = por %p79, %p80
      %p83 = scmp.ne.s32.totalorder %s66, %s82
      %p84 = scmp.eq.s32.totalorder %s20, 0
      %p85 = por %p83, %p84
      %s86 = ssub.s32 %s22, %s29
      %p87 = scmp.eq.s32.totalorder %s86, 0
      %s89 = sadd.s32 %s88, 1
      %s90 = scalar_select %p87, %s88, %s89
      %p93 = pneg %p87
      %p94 = scmp.eq.s32.totalorder %s14, 7
      %p95 = por %p93, %p94
      %p96 = scmp.ne.s32.totalorder %s88, %s91
      %p97 = scmp.eq.s32.totalorder %s14, 0
      %p98 = por %p96, %p97
      %p99 = scmp.ne.s32.totalorder %s88, %s91
      %p100 = scmp.eq.s32.totalorder %s19, 7
      %p101 = por %p99, %p100
      %p102 = scmp.ne.s32.totalorder %s91, %s92
      %p103 = scmp.eq.s32.totalorder %s19, 0
      %p104 = por %p102, %p103
      %p105 = scmp.ne.s32.totalorder %s91, %s92
      %p106 = scmp.eq.s32.totalorder %s20, 7
      %p107 = por %p105, %p106
      %p109 = scmp.ne.s32.totalorder %s92, %s108
      %p110 = scmp.eq.s32.totalorder %s20, 0
      %p111 = por %p109, %p110
      %s112 = ssub.s32 %s22, %s29
      %p113 = scmp.eq.s32.totalorder %s112, 0
      %s115 = sadd.s32 %s114, 1
      %s116 = scalar_select %p113, %s114, %s115
      %p119 = pneg %p113
      %p120 = scmp.eq.s32.totalorder %s14, 7
      %p121 = por %p119, %p120
      %p122 = scmp.ne.s32.totalorder %s114, %s117
      %p123 = scmp.eq.s32.totalorder %s14, 0
      %p124 = por %p122, %p123
      %p125 = scmp.ne.s32.totalorder %s114, %s117
      %p126 = scmp.eq.s32.totalorder %s19, 7
      %p127 = por %p125, %p126
      %p128 = scmp.ne.s32.totalorder %s117, %s118
      %p129 = scmp.eq.s32.totalorder %s19, 0
      %p130 = por %p128, %p129
      %p131 = scmp.ne.s32.totalorder %s117, %s118
      %p132 = scmp.eq.s32.totalorder %s20, 7
      %p133 = por %p131, %p132
      %p135 = scmp.ne.s32.totalorder %s118, %s134
      %p136 = scmp.eq.s32.totalorder %s20, 0
      %p137 = por %p135, %p136
      %s139 = sadd.s32 %s138, 1
      %p142 = scmp.eq.s32.totalorder %s14, 7
      %p143 = scmp.ne.s32.totalorder %s138, %s140
      %p144 = scmp.eq.s32.totalorder %s14, 0
      %p145 = por %p143, %p144
      %p146 = scmp.ne.s32.totalorder %s138, %s140
      %p147 = scmp.eq.s32.totalorder %s19, 7
      %p148 = por %p146, %p147
      %p149 = scmp.ne.s32.totalorder %s140, %s141
      %p150 = scmp.eq.s32.totalorder %s19, 0
      %p151 = por %p149, %p150
      %p152 = scmp.ne.s32.totalorder %s140, %s141
      %p153 = scmp.eq.s32.totalorder %s20, 7
      %p154 = por %p152, %p153
      %p156 = scmp.ne.s32.totalorder %s141, %s155
      %p157 = scmp.eq.s32.totalorder %s20, 0
      %p158 = por %p156, %p157
      %s159 = ssub.s32 %s21, %s33
      %p160 = scmp.eq.s32.totalorder %s159, 0
      %s162 = sadd.s32 %s161, 1
      %s163 = scalar_select %p160, %s161, %s162
      %p166 = pneg %p160
      %p167 = scmp.eq.s32.totalorder %s14, 7
      %p168 = por %p166, %p167
      %p169 = scmp.ne.s32.totalorder %s161, %s164
      %p170 = scmp.eq.s32.totalorder %s14, 0
      %p171 = por %p169, %p170
      %p172 = scmp.ne.s32.totalorder %s161, %s164
      %p173 = scmp.eq.s32.totalorder %s19, 7
      %p174 = por %p172, %p173
      %p175 = scmp.ne.s32.totalorder %s164, %s165
      %p176 = scmp.eq.s32.totalorder %s19, 0
      %p177 = por %p175, %p176
      %p178 = scmp.ne.s32.totalorder %s164, %s165
      %p179 = scmp.eq.s32.totalorder %s20, 7
      %p180 = por %p178, %p179
      %p182 = scmp.ne.s32.totalorder %s165, %s181
      %p183 = scmp.eq.s32.totalorder %s20, 0
      %p184 = por %p182, %p183
      %p185 = scmp.le.s32.totalorder 1, %s14
      %p186 = scmp.lt.s32.totalorder %s14, 9
      %p187 = pnand %p185, %p186
      %p188 = pneg %p187
      // Predicated region
      $region9: #{tpu_custom_call.1} parent=5 // pred_check
        _
      $region10: #{tpu_custom_call.1} parent=5 // pred_check_branch
        %190 = sbr.rel (%p187) target = $region12
      $region11: #{tpu_custom_call.1} parent=5 // pred_region
        %s191 = ssub.s32 %s14, 1
        // Predicated region
        $region13: #{tpu_custom_call.1} parent=11 // pred_check
          %p192 = pneg %p151
        $region14: #{tpu_custom_call.1} parent=11 // pred_check_branch
          %194 = sbr.rel (%p192) target = $region16
        $region15: #{tpu_custom_call.1} parent=11 // pred_region
          _
        $region16: #{tpu_custom_call.1} parent=11 // pred_fallthru
          _
      $region12: #{tpu_custom_call.1} parent=5 // pred_fallthru
        _
      %p195 = scmp.lt.s32.totalorder %s14, 8
      // Predicated region
      $region17: #{tpu_custom_call.1} parent=5 // pred_check
        %p196 = pneg %p195
      $region18: #{tpu_custom_call.1} parent=5 // pred_check_branch
        %198 = sbr.rel (%p196) target = $region20
      $region19: #{tpu_custom_call.1} parent=5 // pred_region
        // Predicated region
        $region21: #{tpu_custom_call.1} parent=19 // pred_check
          %p199 = pneg %p46
        $region22: #{tpu_custom_call.1} parent=19 // pred_check_branch
          %201 = sbr.rel (%p199) target = $region24
        $region23: #{tpu_custom_call.1} parent=19 // pred_region
          %p202 = scmp.lt.s32.totalorder %s21, 1
          %s203 = scalar_select %p202, %s21, 1
          %s204 = smul.addr %s203, 8
          %s205 = scalar_lea.vmem %s0, %s204
        $region24: #{tpu_custom_call.1} parent=19 // pred_fallthru
          _
        // Predicated region
        $region25: #{tpu_custom_call.1} parent=19 // pred_check
          %p206 = pneg %p72
        $region26: #{tpu_custom_call.1} parent=19 // pred_check_branch
          %208 = sbr.rel (%p206) target = $region28
        $region27: #{tpu_custom_call.1} parent=19 // pred_region
          %p209 = scmp.lt.s32.totalorder %s22, 3
          %s210 = scalar_select %p209, %s22, 3
          %s211 = smul.addr %s210, 12
          %s212 = smul.addr %s211, 4
          %s213 = scalar_lea.vmem %s1, %s212
        $region28: #{tpu_custom_call.1} parent=19 // pred_fallthru
          _
        // Predicated region
        $region29: #{tpu_custom_call.1} parent=19 // pred_check
          %p214 = pneg %p98
        $region30: #{tpu_custom_call.1} parent=19 // pred_check_branch
          %216 = sbr.rel (%p214) target = $region32
        $region31: #{tpu_custom_call.1} parent=19 // pred_region
          %p217 = scmp.lt.s32.totalorder %s22, 3
          %s218 = scalar_select %p217, %s22, 3
          %s219 = smul.addr %s218, 3
          %s220 = scalar_lea.vmem %s2, %s219
        $region32: #{tpu_custom_call.1} parent=19 // pred_fallthru
          _
        // Predicated region
        $region33: #{tpu_custom_call.1} parent=19 // pred_check
          %p221 = pneg %p124
        $region34: #{tpu_custom_call.1} parent=19 // pred_check_branch
          %223 = sbr.rel (%p221) target = $region36
        $region35: #{tpu_custom_call.1} parent=19 // pred_region
          %p224 = scmp.lt.s32.totalorder %s22, 3
          %s225 = scalar_select %p224, %s22, 3
          %s226 = smul.addr %s225, 4
          %s227 = scalar_lea.vmem %s3, %s226
        $region36: #{tpu_custom_call.1} parent=19 // pred_fallthru
          _
      $region20: #{tpu_custom_call.1} parent=5 // pred_fallthru
        _
      %p228 = scmp.le.s32.totalorder 1, %s14
      %p229 = scmp.lt.s32.totalorder %s14, 9
      %p230 = pnand %p228, %p229
      %p231 = pneg %p230
      // Predicated region
      $region37: #{tpu_custom_call.1} parent=5 // pred_check
        _
      $region38: #{tpu_custom_call.1} parent=5 // pred_check_branch
        %233 = sbr.rel (%p230) target = $region40
      $region39: #{tpu_custom_call.1} parent=5 // pred_region
        %s234 = ssub.s32 %s14, 1
        %p235 = scmp.lt.s32.totalorder %s23, 1
        %s236 = scalar_select %p235, %s23, 1
        %s237 = smul.addr %s236, 8
        %s238 = scalar_lea.vmem %s0, %s237
        %p239 = pneg %p52
        %p240 = pneg %p49
        %p241 = scmp.lt.s32.totalorder %s24, 3
        %s242 = scalar_select %p241, %s24, 3
        %s243 = smul.addr %s242, 12
        %s244 = smul.addr %s243, 4
        %s245 = scalar_lea.vmem %s1, %s244
        %p246 = pneg %p78
        %p247 = pneg %p75
        %p248 = scmp.lt.s32.totalorder %s24, 3
        %s249 = scalar_select %p248, %s24, 3
        %s250 = smul.addr %s249, 3
        %s251 = scalar_lea.vmem %s2, %s250
        %p252 = pneg %p104
        %p253 = pneg %p101
        %p254 = scmp.lt.s32.totalorder %s24, 3
        %s255 = scalar_select %p254, %s24, 3
        %s256 = smul.addr %s255, 4
        %s257 = scalar_lea.vmem %s3, %s256
        %p258 = pneg %p130
        %p259 = pneg %p127
        %p260 = pneg %p151
        %p261 = pneg %p148
        %p262 = pneg %p177
        %p263 = pneg %p174
        %s264 = sand.u32 %s164, 1
        %s265 = scalar_lea.sflag [#allocation4], %s264
        %s266 = sand.u32 %s164, 1
        %s267 = smul.addr %s266, 8
        %s268 = scalar_lea.vmem [#allocation3], %s267
        %p269 = scmp.lt.s32.totalorder %s23, 1
        %s270 = scalar_select %p269, %s23, 1
        %s271 = smul.addr %s270, 8
        %s272 = scalar_lea.vmem %s0, %s271
        %p273 = scmp.lt.s32.totalorder %s24, 3
        %s274 = scalar_select %p273, %s24, 3
        %s275 = smul.addr %s274, 12
        %s276 = smul.addr %s275, 4
        %s277 = scalar_lea.vmem %s1, %s276
        %p278 = scmp.lt.s32.totalorder %s24, 3
        %s279 = scalar_select %p278, %s24, 3
        %s280 = smul.addr %s279, 3
        %s281 = scalar_lea.vmem %s2, %s280
        %p282 = scmp.lt.s32.totalorder %s24, 3
        %s283 = scalar_select %p282, %s24, 3
        %s284 = smul.addr %s283, 4
        %s285 = scalar_lea.vmem %s3, %s284
        %p287 = scmp.eq.s32.totalorder %s24, 0
        // Predicated region
        $region41: #{tpu_custom_call.1} parent=39 // pred_check
          %p288 = pneg %p287
        $region42: #{tpu_custom_call.1} parent=39 // pred_check_branch
          %290 = sbr.rel (%p288) target = $region44
        $region43: #{tpu_custom_call.1} parent=39 // pred_region
          %vm291 = vcmask 261120
          %292 = vst.msk [vmem:[#allocation2] sm:$0xff] %vm291, 0.0
        $region44: #{tpu_custom_call.1} parent=39 // pred_fallthru
          _
        %v293 = vld [vmem:[%s272] sm:$0xff]
        %v294 = vpack.c.bf16 %v293, %v293
        %v295 = vld [vmem:[%s277] sm:$0xf]
        %v296 = vld [vmem:[%s277 + $0x4] sm:$0xf]
        %v297 = vld [vmem:[%s277 + $0x8] sm:$0xf]
        %v298 = vld [vmem:[%s277 + $0xc] sm:$0xf]
        %v299 = vld [vmem:[%s281] sm:$0x1]
        %v301 = vlaneseq
        %v302 = vshrl.u32 %v301, 7
        %v303 = vsub.s32 0, %v302
        %v304 = vrot.slane %v299, %v303
        %v310 = vunpack.c.l.b16 %v295
        %v311 = vunpack.c.l.b16 %v296
        %v312 = vunpack.c.l.b16 %v297
        %v313 = vunpack.c.l.b16 %v298
        %v314 = vpack.c.b16 %v311, %v310
        %v315 = vpack.c.b16 %v313, %v312
        %vm318 = vcmask 261120
        %v320 = vsel %vm318, %v294, 0
        %322 = vmatprep.subr.bf16.mxu0 0
        %323 = vmatpush1.bf16.msra.mxu0 %v314
        %324 = vmatprep.subr.bf16.mxu0 0
        %325 = vmatpush1.bf16.msra.mxu0 %v315
        %326 = vmatprep.subr.bf16.mxu0 0
        %327 = vmatpush1.bf16.msra.mxu0 0
        %328 = vmatprep.subr.bf16.mxu0 0
        %329 = vmatpush1.bf16.msra.mxu0 0
        %330 = vmatprep.subr.bf16.mxu0 0
        %331 = vmatpush1.bf16.msra.mxu0 0
        %332 = vmatprep.subr.bf16.mxu0 0
        %333 = vmatpush1.bf16.msra.mxu0 0
        %334 = vmatprep.subr.bf16.mxu0 0
        %335 = vmatpush1.bf16.msra.mxu0 0
        %336 = vmatprep.subr.bf16.mxu0 0
        %337 = vmatpush1.bf16.msra.mxu0 0
        %338 = vmatprep.subr.bf16.mxu0 0
        %339 = vmatpush1.bf16.msra.mxu0 0
        %340 = vmatprep.subr.bf16.mxu0 0
        %341 = vmatpush1.bf16.msra.mxu0 0
        %342 = vmatprep.subr.bf16.mxu0 0
        %343 = vmatpush1.bf16.msra.mxu0 0
        %344 = vmatprep.subr.bf16.mxu0 0
        %345 = vmatpush1.bf16.msra.mxu0 0
        %346 = vmatprep.subr.bf16.mxu0 0
        %347 = vmatpush1.bf16.msra.mxu0 0
        %348 = vmatprep.subr.bf16.mxu0 0
        %349 = vmatpush1.bf16.msra.mxu0 0
        %350 = vmatprep.subr.bf16.mxu0 0
        %351 = vmatpush1.bf16.msra.mxu0 0
        %352 = vmatprep.subr.bf16.mxu0 0
        %353 = vmatpush1.bf16.msra.mxu0 0
        %354 = vmatprep.mubr.bf16.mxu0 0
        %355 = vmatmul.mubr.bf16.gmra.mrb[0].mxu0 %v320
        %v356 = vpop.f32.mrb[0].mxu0
        %v357 = vadd.f32 %v304, %v356
        %v358 = vpop.f32.mrb[0].mxu0
        %v359 = vpop.f32.mrb[0].mxu0
        %v360 = vpop.f32.mrb[0].mxu0
        %361 = vdwg.mxu0
        %s362 = scalar_lea.vmem %s277, 16
        %v363 = vld [vmem:[%s362] sm:$0xf]
        %v364 = vld [vmem:[%s362 + $0x4] sm:$0xf]
        %v365 = vld [vmem:[%s362 + $0x8] sm:$0xf]
        %v366 = vld [vmem:[%s362 + $0xc] sm:$0xf]
        %s367 = scalar_lea.vmem %s281, 1
        %v368 = vld [vmem:[%s367] sm:$0x1]
        %v370 = vlaneseq
        %v371 = vshrl.u32 %v370, 7
        %v372 = vsub.s32 0, %v371
        %v373 = vrot.slane %v368, %v372
        %v379 = vunpack.c.l.b16 %v363
        %v380 = vunpack.c.l.b16 %v364
        %v381 = vunpack.c.l.b16 %v365
        %v382 = vunpack.c.l.b16 %v366
        %v383 = vpack.c.b16 %v380, %v379
        %v384 = vpack.c.b16 %v382, %v381
        %387 = vmatprep.subr.bf16.mxu0 0
        %388 = vmatpush1.bf16.msra.mxu0 %v383
        %389 = vmatprep.subr.bf16.mxu0 0
        %390 = vmatpush1.bf16.msra.mxu0 %v384
        %391 = vmatprep.subr.bf16.mxu0 0
        %392 = vmatpush1.bf16.msra.mxu0 0
        %393 = vmatprep.subr.bf16.mxu0 0
        %394 = vmatpush1.bf16.msra.mxu0 0
        %395 = vmatprep.subr.bf16.mxu0 0
        %396 = vmatpush1.bf16.msra.mxu0 0
        %397 = vmatprep.subr.bf16.mxu0 0
        %398 = vmatpush1.bf16.msra.mxu0 0
        %399 = vmatprep.subr.bf16.mxu0 0
        %400 = vmatpush1.bf16.msra.mxu0 0
        %401 = vmatprep.subr.bf16.mxu0 0
        %402 = vmatpush1.bf16.msra.mxu0 0
        %403 = vmatprep.subr.bf16.mxu0 0
        %404 = vmatpush1.bf16.msra.mxu0 0
        %405 = vmatprep.subr.bf16.mxu0 0
        %406 = vmatpush1.bf16.msra.mxu0 0
        %407 = vmatprep.subr.bf16.mxu0 0
        %408 = vmatpush1.bf16.msra.mxu0 0
        %409 = vmatprep.subr.bf16.mxu0 0
        %410 = vmatpush1.bf16.msra.mxu0 0
        %411 = vmatprep.subr.bf16.mxu0 0
        %412 = vmatpush1.bf16.msra.mxu0 0
        %413 = vmatprep.subr.bf16.mxu0 0
        %414 = vmatpush1.bf16.msra.mxu0 0
        %415 = vmatprep.subr.bf16.mxu0 0
        %416 = vmatpush1.bf16.msra.mxu0 0
        %417 = vmatprep.subr.bf16.mxu0 0
        %418 = vmatpush1.bf16.msra.mxu0 0
        %419 = vmatprep.mubr.bf16.mxu0 0
        %420 = vmatmul.mubr.bf16.gmra.mrb[0].mxu0 %v320
        %v421 = vpop.f32.mrb[0].mxu0
        %v422 = vadd.f32 %v373, %v421
        %v423 = vpop.f32.mrb[0].mxu0
        %v424 = vpop.f32.mrb[0].mxu0
        %v425 = vpop.f32.mrb[0].mxu0
        %426 = vdwg.mxu0
        %s427 = scalar_lea.vmem %s277, 32
        %v428 = vld [vmem:[%s427] sm:$0xf]
        %v429 = vld [vmem:[%s427 + $0x4] sm:$0xf]
        %v430 = vld [vmem:[%s427 + $0x8] sm:$0xf]
        %v431 = vld [vmem:[%s427 + $0xc] sm:$0xf]
        %s432 = scalar_lea.vmem %s281, 2
        %v433 = vld [vmem:[%s432] sm:$0x1]
        %v435 = vlaneseq
        %v436 = vshrl.u32 %v435, 7
        %v437 = vsub.s32 0, %v436
        %v438 = vrot.slane %v433, %v437
        %v444 = vunpack.c.l.b16 %v428
        %v445 = vunpack.c.l.b16 %v429
        %v446 = vunpack.c.l.b16 %v430
        %v447 = vunpack.c.l.b16 %v431
        %v448 = vpack.c.b16 %v445, %v444
        %v449 = vpack.c.b16 %v447, %v446
        %452 = vmatprep.subr.bf16.mxu0 0
        %453 = vmatpush1.bf16.msra.mxu0 %v448
        %454 = vmatprep.subr.bf16.mxu0 0
        %455 = vmatpush1.bf16.msra.mxu0 %v449
        %456 = vmatprep.subr.bf16.mxu0 0
        %457 = vmatpush1.bf16.msra.mxu0 0
        %458 = vmatprep.subr.bf16.mxu0 0
        %459 = vmatpush1.bf16.msra.mxu0 0
        %460 = vmatprep.subr.bf16.mxu0 0
        %461 = vmatpush1.bf16.msra.mxu0 0
        %462 = vmatprep.subr.bf16.mxu0 0
        %463 = vmatpush1.bf16.msra.mxu0 0
        %464 = vmatprep.subr.bf16.mxu0 0
        %465 = vmatpush1.bf16.msra.mxu0 0
        %466 = vmatprep.subr.bf16.mxu0 0
        %467 = vmatpush1.bf16.msra.mxu0 0
        %468 = vmatprep.subr.bf16.mxu0 0
        %469 = vmatpush1.bf16.msra.mxu0 0
        %470 = vmatprep.subr.bf16.mxu0 0
        %471 = vmatpush1.bf16.msra.mxu0 0
        %472 = vmatprep.subr.bf16.mxu0 0
        %473 = vmatpush1.bf16.msra.mxu0 0
        %474 = vmatprep.subr.bf16.mxu0 0
        %475 = vmatpush1.bf16.msra.mxu0 0
        %476 = vmatprep.subr.bf16.mxu0 0
        %477 = vmatpush1.bf16.msra.mxu0 0
        %478 = vmatprep.subr.bf16.mxu0 0
        %479 = vmatpush1.bf16.msra.mxu0 0
        %480 = vmatprep.subr.bf16.mxu0 0
        %481 = vmatpush1.bf16.msra.mxu0 0
        %482 = vmatprep.subr.bf16.mxu0 0
        %483 = vmatpush1.bf16.msra.mxu0 0
        %484 = vmatprep.mubr.bf16.mxu0 0
        %485 = vmatmul.mubr.bf16.gmra.mrb[0].mxu0 %v320
        %v486 = vpop.f32.mrb[0].mxu0
        %v487 = vadd.f32 %v438, %v486
        %v488 = vpop.f32.mrb[0].mxu0
        %v489 = vpop.f32.mrb[0].mxu0
        %v490 = vpop.f32.mrb[0].mxu0
        %491 = vdwg.mxu0
        %v492 = vpack.c.bf16 %v357, %v357
        %v493 = vpack.c.bf16 %v422, %v422
        %vm494 = vcmask 64512
        %v496 = vsel %vm494, %v492, 0
        %v499 = vsel %vm494, %v493, 0
        %501 = vmatprep.subr.bf16.mxu0 0
        %502 = vmatpush1.bf16.xpose.msra.mxu0 %v499
        %503 = vmatprep.subr.bf16.mxu0 0
        %504 = vmatpush1.bf16.xpose.msra.mxu0 0
        %505 = vmatprep.subr.bf16.mxu0 0
        %506 = vmatpush1.bf16.xpose.msra.mxu0 0
        %507 = vmatprep.subr.bf16.mxu0 0
        %508 = vmatpush1.bf16.xpose.msra.mxu0 0
        %509 = vmatprep.subr.bf16.mxu0 0
        %510 = vmatpush1.bf16.xpose.msra.mxu0 0
        %511 = vmatprep.subr.bf16.mxu0 0
        %512 = vmatpush1.bf16.xpose.msra.mxu0 0
        %513 = vmatprep.subr.bf16.mxu0 0
        %514 = vmatpush1.bf16.xpose.msra.mxu0 0
        %515 = vmatprep.subr.bf16.mxu0 0
        %516 = vmatpush1.bf16.xpose.msra.mxu0 0
        %517 = vmatprep.subr.bf16.mxu0 0
        %518 = vmatpush1.bf16.xpose.msra.mxu0 0
        %519 = vmatprep.subr.bf16.mxu0 0
        %520 = vmatpush1.bf16.xpose.msra.mxu0 0
        %521 = vmatprep.subr.bf16.mxu0 0
        %522 = vmatpush1.bf16.xpose.msra.mxu0 0
        %523 = vmatprep.subr.bf16.mxu0 0
        %524 = vmatpush1.bf16.xpose.msra.mxu0 0
        %525 = vmatprep.subr.bf16.mxu0 0
        %526 = vmatpush1.bf16.xpose.msra.mxu0 0
        %527 = vmatprep.subr.bf16.mxu0 0
        %528 = vmatpush1.bf16.xpose.msra.mxu0 0
        %529 = vmatprep.subr.bf16.mxu0 0
        %530 = vmatpush1.bf16.xpose.msra.mxu0 0
        %531 = vmatprep.subr.bf16.mxu0 0
        %532 = vmatpush1.bf16.xpose.msra.mxu0 0
        %533 = vmatprep.mubr.bf16.mxu0 0
        %534 = vmatmul.mubr.bf16.gmra.mrb[0].mxu0 %v496
        %v535 = vpop.f32.mrb[0].mxu0
        %v536 = vadd.f32 0.0, %v535
        %v537 = vpop.f32.mrb[0].mxu0
        %v538 = vpop.f32.mrb[0].mxu0
        %v539 = vpop.f32.mrb[0].mxu0
        %540 = vdwg.mxu0
        %v541 = vsel %vm494, %v536, -inf
        %542 = vmax.xlane.f32.xlu0 %v541
        %v543 = vpop.xlane.xlu0 %542
        %v544 = vsub.f32 %v536, %v543
        %v545 = vmul.f32 %v544, 1.442695
        %v546 = vpow.pop %v545
        %v547 = vsel %vm494, %v546, 0.0
        %548 = vadd.xlane.f32.xlu0 %v547
        %v549 = vpop.xlane.xlu0 %548
        %v550 = vrcp.pop %v549
        %v551 = vmul.f32 %v546, %v550
        %v552 = vpack.c.bf16 %v551, %v551
        %v553 = vpack.c.bf16 %v487, %v487
        %v555 = vsel %vm494, %v552, 0
        %vm557 = vcmask 1043456
        %v559 = vsel %vm557, %v553, 0
        %561 = vmatprep.subr.bf16.mxu0 0
        %562 = vmatpush1.bf16.msra.mxu0 %v559
        %563 = vmatprep.subr.bf16.mxu0 0
        %564 = vmatpush1.bf16.msra.mxu0 0
        %565 = vmatprep.subr.bf16.mxu0 0
        %566 = vmatpush1.bf16.msra.mxu0 0
        %567 = vmatprep.subr.bf16.mxu0 0
        %568 = vmatpush1.bf16.msra.mxu0 0
        %569 = vmatprep.subr.bf16.mxu0 0
        %570 = vmatpush1.bf16.msra.mxu0 0
        %571 = vmatprep.subr.bf16.mxu0 0
        %572 = vmatpush1.bf16.msra.mxu0 0
        %573 = vmatprep.subr.bf16.mxu0 0
        %574 = vmatpush1.bf16.msra.mxu0 0
        %575 = vmatprep.subr.bf16.mxu0 0
        %576 = vmatpush1.bf16.msra.mxu0 0
        %577 = vmatprep.subr.bf16.mxu0 0
        %578 = vmatpush1.bf16.msra.mxu0 0
        %579 = vmatprep.subr.bf16.mxu0 0
        %580 = vmatpush1.bf16.msra.mxu0 0
        %581 = vmatprep.subr.bf16.mxu0 0
        %582 = vmatpush1.bf16.msra.mxu0 0
        %583 = vmatprep.subr.bf16.mxu0 0
        %584 = vmatpush1.bf16.msra.mxu0 0
        %585 = vmatprep.subr.bf16.mxu0 0
        %586 = vmatpush1.bf16.msra.mxu0 0
        %587 = vmatprep.subr.bf16.mxu0 0
        %588 = vmatpush1.bf16.msra.mxu0 0
        %589 = vmatprep.subr.bf16.mxu0 0
        %590 = vmatpush1.bf16.msra.mxu0 0
        %591 = vmatprep.subr.bf16.mxu0 0
        %592 = vmatpush1.bf16.msra.mxu0 0
        %593 = vmatprep.mubr.bf16.mxu0 0
        %594 = vmatmul.mubr.bf16.gmra.mrb[0].mxu0 %v555
        %v595 = vpop.f32.mrb[0].mxu0
        %v596 = vadd.f32 0.0, %v595
        %v597 = vpop.f32.mrb[0].mxu0
        %v598 = vpop.f32.mrb[0].mxu0
        %v599 = vpop.f32.mrb[0].mxu0
        %600 = vdwg.mxu0
        %v601 = vld [vmem:[#allocation2] sm:$0xff]
        %v602 = vpack.c.bf16 %v596, %v596
        %v603 = vld [vmem:[%s285] sm:$0xf]
        %v605 = vsel %vm494, %v602, 0
        %v608 = vsel %vm557, %v603, 0
        %610 = vmatprep.subr.bf16.mxu0 0
        %611 = vmatpush1.bf16.msra.mxu0 %v608
        %612 = vmatprep.subr.bf16.mxu0 0
        %613 = vmatpush1.bf16.msra.mxu0 0
        %614 = vmatprep.subr.bf16.mxu0 0
        %615 = vmatpush1.bf16.msra.mxu0 0
        %616 = vmatprep.subr.bf16.mxu0 0
        %617 = vmatpush1.bf16.msra.mxu0 0
        %618 = vmatprep.subr.bf16.mxu0 0
        %619 = vmatpush1.bf16.msra.mxu0 0
        %620 = vmatprep.subr.bf16.mxu0 0
        %621 = vmatpush1.bf16.msra.mxu0 0
        %622 = vmatprep.subr.bf16.mxu0 0
        %623 = vmatpush1.bf16.msra.mxu0 0
        %624 = vmatprep.subr.bf16.mxu0 0
        %625 = vmatpush1.bf16.msra.mxu0 0
        %626 = vmatprep.subr.bf16.mxu0 0
        %627 = vmatpush1.bf16.msra.mxu0 0
        %628 = vmatprep.subr.bf16.mxu0 0
        %629 = vmatpush1.bf16.msra.mxu0 0
        %630 = vmatprep.subr.bf16.mxu0 0
        %631 = vmatpush1.bf16.msra.mxu0 0
        %632 = vmatprep.subr.bf16.mxu0 0
        %633 = vmatpush1.bf16.msra.mxu0 0
        %634 = vmatprep.subr.bf16.mxu0 0
        %635 = vmatpush1.bf16.msra.mxu0 0
        %636 = vmatprep.subr.bf16.mxu0 0
        %637 = vmatpush1.bf16.msra.mxu0 0
        %638 = vmatprep.subr.bf16.mxu0 0
        %639 = vmatpush1.bf16.msra.mxu0 0
        %640 = vmatprep.subr.bf16.mxu0 0
        %641 = vmatpush1.bf16.msra.mxu0 0
        %642 = vmatprep.mubr.bf16.mxu0 0
        %643 = vmatmul.mubr.bf16.gmra.mrb[0].mxu0 %v605
        %v644 = vpop.f32.mrb[0].mxu0
        %v645 = vadd.f32 0.0, %v644
        %v646 = vpop.f32.mrb[0].mxu0
        %v647 = vpop.f32.mrb[0].mxu0
        %v648 = vpop.f32.mrb[0].mxu0
        %649 = vdwg.mxu0
        %v650 = vadd.f32 %v601, %v645
        %651 = vst.msk [vmem:[#allocation2] sm:$0xff] %vm318, %v650
        %p652 = scmp.eq.s32.totalorder %s24, 3
        // Predicated region
        $region45: #{tpu_custom_call.1} parent=39 // pred_check
          %p653 = pneg %p652
        $region46: #{tpu_custom_call.1} parent=39 // pred_check_branch
          %655 = sbr.rel (%p653) target = $region48
        $region47: #{tpu_custom_call.1} parent=39 // pred_region
          %v656 = vld [vmem:[#allocation2] sm:$0xff]
          %v657 = vld [vmem:[%s4] sm:$0x1]
          %v659 = vlaneseq
          %v660 = vshrl.u32 %v659, 7
          %v661 = vsub.s32 0, %v660
          %v662 = vrot.slane %v657, %v661
          %v664 = vadd.f32 %v656, %v662
          %665 = vst.msk [vmem:[%s268] sm:$0xff] %vm318, %v664
        $region48: #{tpu_custom_call.1} parent=39 // pred_fallthru
          _
        %s666 = sand.u32 %s164, 1
        %s667 = scalar_lea.sflag [#allocation4], %s666
        %s668 = sand.u32 %s164, 1
        %s669 = smul.addr %s668, 8
        %s670 = scalar_lea.vmem [#allocation3], %s669
        // Predicated region
        $region49: #{tpu_custom_call.1} parent=39 // pred_check
          %p671 = pneg %p174
        $region50: #{tpu_custom_call.1} parent=39 // pred_check_branch
          %673 = sbr.rel (%p671) target = $region52
        $region51: #{tpu_custom_call.1} parent=39 // pred_region
          %s675 = ssub.s32 128, 128
          %676 = vsyncadd %s667, %s675
          %s677 = smul.addr %s23, 128
          %s678 = scalar_lea.hbm %s5, %s677
          %s680 = sshll.u32 %s670, 4
          %s681 = int_to_ptr.vmem [resolvable:$true] %s680
          %683 = dma.vmem_to_hbm [thread:$0]  %s681, 128, %s678, %s667
        $region52: #{tpu_custom_call.1} parent=39 // pred_fallthru
          _
      $region40: #{tpu_custom_call.1} parent=5 // pred_fallthru
        _
      %p684 = scmp.le.s32.totalorder 2, %s14
      // Predicated region
      $region53: #{tpu_custom_call.1} parent=5 // pred_check
        %p685 = pneg %p684
      $region54: #{tpu_custom_call.1} parent=5 // pred_check_branch
        %687 = sbr.rel (%p685) target = $region56
      $region55: #{tpu_custom_call.1} parent=5 // pred_region
        %s688 = ssub.s32 %s14, 2
        // Predicated region
        $region57: #{tpu_custom_call.1} parent=55 // pred_check
          %p689 = pneg %p180
        $region58: #{tpu_custom_call.1} parent=55 // pred_check_branch
          %691 = sbr.rel (%p689) target = $region60
        $region59: #{tpu_custom_call.1} parent=55 // pred_region
          %s692 = sand.u32 %s165, 1
          %s693 = scalar_lea.sflag [#allocation4], %s692
          %s694 = sand.u32 %s165, 1
          %s695 = smul.addr %s694, 8
          %s696 = scalar_lea.vmem [#allocation3], %s695
          %697 = dma.done %s693, 128
        $region60: #{tpu_custom_call.1} parent=55 // pred_fallthru
          _
      $region56: #{tpu_custom_call.1} parent=5 // pred_fallthru
        _
    $region6: #{tpu_custom_call.1} parent=1 // loop_footer
      %s18 = sadd.s32 1, %s14
    $region7: #{tpu_custom_call.1} parent=1 // loop_footer_branch
      %13 = sbr.rel target = $region3
    $region8: #{tpu_custom_call.1} parent=1 // loop_exit
      _
    %698 = vsyncpa [#allocation4], 1
    %s699 = scalar_lea.sflag [#allocation4], 1
    %700 = vsyncpa %s699, 1

</llo_original>
